<compile_context>
chip_gen: v5e
topology: v5e:2x2
jax: 0.10.0
libtpu: 0.0.40
codegen_flags: <defaults>
</compile_context>

<pallas_src>
import math
import functools

import jax
import jax.numpy as jnp
from jax.experimental import pallas as pl
from jax.experimental.pallas import tpu as pltpu


def _window_embed_kernel(x_ref, w_ref, b_ref, o_ref, *,
                         kernel_size, pad_left, seq_len):
    """One row-tile (an integer number of whole sequences) per grid step.

    x_ref: (M_blk, d_in)          flattened (batch*seq, d_in) rows, UNPADDED
    w_ref: (K, d_in, d_hid_pad)   conv taps, transposed + lane-padded, whole slab
    b_ref: (1, d_hid_pad)         lane-padded bias
    o_ref: (M_blk, d_hid_pad)
    """
    x = x_ref[...]
    m_blk = x.shape[0]
    d_hid_pad = o_ref.shape[-1]

    # Bias-initialized f32 accumulator (broadcast hoisted, no epilogue add).
    acc = jnp.broadcast_to(b_ref[...], (m_blk, d_hid_pad)).astype(jnp.float32)

    # Within-sequence position of every row.  Tiles always contain whole
    # sequences, so the local row index modulo seq_len is the sequence index.
    row = jax.lax.broadcasted_iota(jnp.int32, (m_blk, x.shape[1]), 0)
    if (seq_len & (seq_len - 1)) == 0:          # power-of-two fast path
        s_idx = row & (seq_len - 1)
    else:
        s_idx = row % seq_len

    # K shifted full-width MXU matmuls.  'same' padding: roll the flattened
    # rows (static shift, XLU) and zero rows whose source index falls outside
    # its own sequence — this also kills any cross-sequence rows the roll
    # wrapped in, so no host padding and no halo DMA are needed.
    for k in range(kernel_size):
        delta = k - pad_left                    # static tap offset
        if delta == 0:
            xk = x
        else:
            xk = pltpu.roll(x, (-delta) % m_blk, 0)
            valid = (s_idx >= -delta) & (s_idx < seq_len - delta)
            xk = jnp.where(valid, xk, 0.0)
        acc = acc + jnp.dot(xk, w_ref[k], preferred_element_type=jnp.float32)

    o_ref[...] = acc.astype(o_ref.dtype)


def bnt_window_embeddings(x, params, *, embed_type="conv", rows_per_step=512):
    """Pallas implementation of BNTWindowEmbeddings.forward.

    x: (B, S, d_in).  Returns (B, S, d_hid).

    params (PyTorch conventions):
      embed_type='conv'  : weight (d_hid, d_in, K), bias (d_hid,)
      embed_type='linear': weight (d_hid, d_in),    bias (d_hid,)
    """
    B, S, d_in = x.shape

    if embed_type == "conv":
        W = params["weight"]                      # (d_hid, d_in, K)
        b = params["bias"]                        # (d_hid,)
        d_hid, _, K = W.shape
        pad_left = (K - 1) // 2                   # PyTorch 'same', stride 1
        w_packed = jnp.transpose(W, (2, 1, 0))    # (K, d_in, d_hid), once, host
    elif embed_type == "linear":
        W = params["weight"]                      # (d_hid, d_in)
        b = params["bias"]
        d_hid = W.shape[0]
        K, pad_left = 1, 0
        w_packed = W.T[None]                      # (1, d_in, d_hid)
    else:
        raise NotImplementedError(f"Embedding type {embed_type} not implemented")

    # Lane-dense output: pad d_hid to a multiple of 128 so stores are unmasked
    # vst.  Weight columns and bias are zero-padded once; output is sliced
    # back below (only when padding was actually applied).
    LANE = 128
    d_hid_pad = ((d_hid + LANE - 1) // LANE) * LANE
    if d_hid_pad != d_hid:
        w_packed = jnp.pad(w_packed, ((0, 0), (0, 0), (0, d_hid_pad - d_hid)))
        b = jnp.pad(b, (0, d_hid_pad - d_hid))
    b2 = b.reshape(1, d_hid_pad)

    # Flatten batch*seq into rows (free contiguous reshape) and tile over
    # whole sequences; at small B*S this collapses to a single grid step.
    M = B * S
    b_blk = max(1, min(B, max(1, rows_per_step // S)))
    while B % b_blk != 0:
        b_blk -= 1
    if (b_blk * S) % 8 != 0:                      # keep tiled blocks sublane-aligned
        b_blk = B
    m_blk = b_blk * S
    num_tiles = B // b_blk
    x2 = x.reshape(M, d_in)

    kernel = functools.partial(_window_embed_kernel, kernel_size=K,
                               pad_left=pad_left, seq_len=S)

    itemsize = jnp.dtype(x.dtype).itemsize
    vmem_est = (2 * m_blk * d_in * itemsize            # x tile (double-buffered)
                + 2 * m_blk * d_hid_pad * itemsize     # out tile (double-buffered)
                + 2 * K * d_in * d_hid_pad * 4         # weight slab
                + 2 * d_hid_pad * 4                    # bias
                + (4 << 20))                           # accumulator + headroom
    vmem_limit = int(min(max(vmem_est, 16 << 20), 60 << 20))   # v7x-safe cap

    out = pl.pallas_call(
        kernel,
        out_shape=jax.ShapeDtypeStruct((M, d_hid_pad), x.dtype),
        grid_spec=pltpu.PrefetchScalarGridSpec(
            num_scalar_prefetch=0,
            grid=(num_tiles,),
            in_specs=[
                pl.BlockSpec((m_blk, d_in), lambda t: (t, 0)),       # x rows
                # TODO(synk): on v7x with very large d_in*d_hid, single-buffer
                # the weight slab (pipeline_mode=pl.Buffered(1)) and tile the
                # sequence with a K-1 halo to fit the 64 MiB VMEM.
                pl.BlockSpec((K, d_in, d_hid_pad), lambda t: (0, 0, 0)),
                pl.BlockSpec((1, d_hid_pad), lambda t: (0, 0)),      # bias
            ],
            out_specs=pl.BlockSpec((m_blk, d_hid_pad), lambda t: (t, 0)),
        ),
        compiler_params=pltpu.CompilerParams(
            dimension_semantics=("parallel",),
            vmem_limit_bytes=vmem_limit),
    )(x2, w_packed, b2)

    out = out.reshape(B, S, d_hid_pad)
    if d_hid_pad != d_hid:
        out = out[..., :d_hid]
    return out


def _reference(x, params, *, embed_type="conv"):
    """Pure-JAX reference mirroring the PyTorch module."""
    if embed_type == "conv":
        W = params["weight"]                      # (d_hid, d_in, K)
        b = params["bias"]
        K = W.shape[2]
        total_pad = K - 1
        pad_l = total_pad // 2
        pad_r = total_pad - pad_l
        y = jax.lax.conv_general_dilated(
            jnp.transpose(x, (0, 2, 1)),          # (B, d_in, S)
            W,                                    # (d_hid, d_in, K)
            window_strides=(1,),
            padding=[(pad_l, pad_r)],
            dimension_numbers=("NCW", "OIW", "NCW"))
        return jnp.transpose(y, (0, 2, 1)) + b
    elif embed_type == "linear":
        return x @ params["weight"].T + params["bias"]
    else:
        raise NotImplementedError(embed_type)


if __name__ == "__main__":
    # Small shapes consistent with the module: seq=16, d_in=16, d_hid=32, K=3.
    B, S, D_IN, D_HID, K = 2, 16, 16, 32, 3

    key = jax.random.PRNGKey(0)
    kx, kcw, kcb, klw, klb = jax.random.split(key, 5)
    x = jax.random.normal(kx, (B, S, D_IN), dtype=jnp.float32)

    conv_scale = 1.0 / math.sqrt(D_IN * K)
    conv_params = {
        "weight": conv_scale * jax.random.normal(kcw, (D_HID, D_IN, K), dtype=jnp.float32),
        "bias":   conv_scale * jax.random.normal(kcb, (D_HID,), dtype=jnp.float32),
    }
    lin_scale = 1.0 / math.sqrt(D_IN)
    lin_params = {
        "weight": lin_scale * jax.random.normal(klw, (D_HID, D_IN), dtype=jnp.float32),
        "bias":   lin_scale * jax.random.normal(klb, (D_HID,), dtype=jnp.float32),
    }

    # Single-step path (whole batch in one grid step).
    out_conv = jax.block_until_ready(
        bnt_window_embeddings(x, conv_params, embed_type="conv"))
    out_lin = jax.block_until_ready(
        bnt_window_embeddings(x, lin_params, embed_type="linear"))
    # Tiled path (forces num_tiles > 1) to exercise the grid pipeline too.
    out_conv_t = jax.block_until_ready(
        bnt_window_embeddings(x, conv_params, embed_type="conv", rows_per_step=16))

    ref_conv = _reference(x, conv_params, embed_type="conv")
    ref_lin = _reference(x, lin_params, embed_type="linear")

    assert out_conv.shape == (B, S, D_HID)
    assert out_lin.shape == (B, S, D_HID)
    assert jnp.allclose(out_conv, ref_conv, atol=1e-5, rtol=1e-5)
    assert jnp.allclose(out_conv_t, ref_conv, atol=1e-5, rtol=1e-5)
    assert jnp.allclose(out_lin, ref_lin, atol=1e-5, rtol=1e-5)

    print("KERNEL_OK")
</pallas_src>

<mosaic_0001>
module attributes {stable_mosaic.version = 11 : i64} {
  func.func @_window_embed_kernel(%arg0: i32, %arg1: memref<32x16xf32, #tpu.memory_space<vmem>>, %arg2: memref<3x16x128xf32, #tpu.memory_space<vmem>>, %arg3: memref<1x128xf32, #tpu.memory_space<vmem>>, %arg4: memref<32x128xf32, #tpu.memory_space<vmem>>) attributes {dimension_semantics = [#tpu.dimension_semantics<parallel>], iteration_bounds = array<i64: 1>, scalar_prefetch = 0 : i64, scratch_operands = 0 : i64, tpu.core_type = #tpu.core_type<tc>, window_params = [{transform_indices = @transform_0, window_bounds = array<i64: 32, 16>}, {pipeline_mode = #tpu.pipeline_mode<synchronous>, transform_indices = @transform_1, window_bounds = array<i64: 3, 16, 128>}, {pipeline_mode = #tpu.pipeline_mode<synchronous>, transform_indices = @transform_2, window_bounds = array<i64: 1, 128>}, {transform_indices = @transform_3, window_bounds = array<i64: 32, 128>}]} {
    %c0 = arith.constant 0 : index
    %c0_0 = arith.constant 0 : index
    %0 = vector.load %arg1[%c0, %c0_0] : memref<32x16xf32, #tpu.memory_space<vmem>>, vector<32x16xf32>
    %c0_1 = arith.constant 0 : index
    %c0_2 = arith.constant 0 : index
    %1 = vector.load %arg3[%c0_1, %c0_2] : memref<1x128xf32, #tpu.memory_space<vmem>>, vector<1x128xf32>
    %2 = vector.shape_cast %1 : vector<1x128xf32> to vector<1x128xf32>
    %3 = vector.broadcast %2 : vector<1x128xf32> to vector<32x128xf32>
    %4 = tpu.iota {dimensions = array<i32: 0>} : vector<32x16xi32>
    %c15_i32 = arith.constant 15 : i32
    %5 = vector.broadcast %c15_i32 : i32 to vector<32x16xi32>
    %6 = arith.andi %4, %5 : vector<32x16xi32>
    %c1_i32 = arith.constant 1 : i32
    %7 = tpu.dynamic_rotate %0 by %c1_i32 dim 0 : vector<32x16xf32>, i32 -> vector<32x16xf32>
    %c1_i32_3 = arith.constant 1 : i32
    %8 = vector.broadcast %c1_i32_3 : i32 to vector<32x16xi32>
    %9 = arith.cmpi sge, %6, %8 : vector<32x16xi32>
    %c17_i32 = arith.constant 17 : i32
    %10 = vector.broadcast %c17_i32 : i32 to vector<32x16xi32>
    %11 = arith.cmpi slt, %6, %10 : vector<32x16xi32>
    %12 = arith.andi %9, %11 : vector<32x16xi1>
    %cst = arith.constant 0.000000e+00 : f32
    %13 = vector.broadcast %cst : f32 to vector<32x16xf32>
    %14 = arith.select %12, %7, %13 : vector<32x16xi1>, vector<32x16xf32>
    %c0_4 = arith.constant 0 : index
    %c0_5 = arith.constant 0 : index
    %c0_6 = arith.constant 0 : index
    %15 = vector.load %arg2[%c0_4, %c0_5, %c0_6] : memref<3x16x128xf32, #tpu.memory_space<vmem>>, vector<1x16x128xf32>
    %16 = vector.shape_cast %15 : vector<1x16x128xf32> to vector<16x128xf32>
    %cst_7 = arith.constant dense<0.000000e+00> : vector<32x128xf32>
    %17 = tpu.matmul %14, %16, %cst_7 {dimension_numbers = #tpu.dot_dimension_numbers<[1], [0], [0], [1], [0, 0, 1, 1], [], []>} : vector<32x16xf32>, vector<16x128xf32>, vector<32x128xf32> -> vector<32x128xf32>
    %18 = arith.addf %3, %17 : vector<32x128xf32>
    %c1 = arith.constant 1 : index
    %c0_8 = arith.constant 0 : index
    %c0_9 = arith.constant 0 : index
    %19 = vector.load %arg2[%c1, %c0_8, %c0_9] : memref<3x16x128xf32, #tpu.memory_space<vmem>>, vector<1x16x128xf32>
    %20 = vector.shape_cast %19 : vector<1x16x128xf32> to vector<16x128xf32>
    %cst_10 = arith.constant dense<0.000000e+00> : vector<32x128xf32>
    %21 = tpu.matmul %0, %20, %cst_10 {dimension_numbers = #tpu.dot_dimension_numbers<[1], [0], [0], [1], [0, 0, 1, 1], [], []>} : vector<32x16xf32>, vector<16x128xf32>, vector<32x128xf32> -> vector<32x128xf32>
    %22 = arith.addf %18, %21 : vector<32x128xf32>
    %c31_i32 = arith.constant 31 : i32
    %23 = tpu.dynamic_rotate %0 by %c31_i32 dim 0 : vector<32x16xf32>, i32 -> vector<32x16xf32>
    %c-1_i32 = arith.constant -1 : i32
    %24 = vector.broadcast %c-1_i32 : i32 to vector<32x16xi32>
    %25 = arith.cmpi sge, %6, %24 : vector<32x16xi32>
    %c15_i32_11 = arith.constant 15 : i32
    %26 = vector.broadcast %c15_i32_11 : i32 to vector<32x16xi32>
    %27 = arith.cmpi slt, %6, %26 : vector<32x16xi32>
    %28 = arith.andi %25, %27 : vector<32x16xi1>
    %cst_12 = arith.constant 0.000000e+00 : f32
    %29 = vector.broadcast %cst_12 : f32 to vector<32x16xf32>
    %30 = arith.select %28, %23, %29 : vector<32x16xi1>, vector<32x16xf32>
    %c2 = arith.constant 2 : index
    %c0_13 = arith.constant 0 : index
    %c0_14 = arith.constant 0 : index
    %31 = vector.load %arg2[%c2, %c0_13, %c0_14] : memref<3x16x128xf32, #tpu.memory_space<vmem>>, vector<1x16x128xf32>
    %32 = vector.shape_cast %31 : vector<1x16x128xf32> to vector<16x128xf32>
    %cst_15 = arith.constant dense<0.000000e+00> : vector<32x128xf32>
    %33 = tpu.matmul %30, %32, %cst_15 {dimension_numbers = #tpu.dot_dimension_numbers<[1], [0], [0], [1], [0, 0, 1, 1], [], []>} : vector<32x16xf32>, vector<16x128xf32>, vector<32x128xf32> -> vector<32x128xf32>
    %34 = arith.addf %22, %33 : vector<32x128xf32>
    %c0_16 = arith.constant 0 : index
    %c0_17 = arith.constant 0 : index
    %35 = vector.load %arg4[%c0_16, %c0_17] : memref<32x128xf32, #tpu.memory_space<vmem>>, vector<32x128xf32>
    tpu.vector_store %arg4[%c0_16, %c0_17], %34 {strides = array<i32>} : memref<32x128xf32, #tpu.memory_space<vmem>>, vector<32x128xf32>,
    return
  }
  func.func @transform_0(%arg0: i32) -> (i32, i32) {
    %c0_i32 = arith.constant 0 : i32
    %c0_i32_0 = arith.constant 0 : i32
    return %arg0, %c0_i32 : i32, i32
  }
  func.func @transform_1(%arg0: i32) -> (i32, i32, i32) {
    %c0_i32 = arith.constant 0 : i32
    %c0_i32_0 = arith.constant 0 : i32
    %c0_i32_1 = arith.constant 0 : i32
    %c0_i32_2 = arith.constant 0 : i32
    return %c0_i32, %c0_i32_0, %c0_i32_1 : i32, i32, i32
  }
  func.func @transform_2(%arg0: i32) -> (i32, i32) {
    %c0_i32 = arith.constant 0 : i32
    %c0_i32_0 = arith.constant 0 : i32
    %c0_i32_1 = arith.constant 0 : i32
    return %c0_i32, %c0_i32_0 : i32, i32
  }
  func.func @transform_3(%arg0: i32) -> (i32, i32) {
    %c0_i32 = arith.constant 0 : i32
    %c0_i32_0 = arith.constant 0 : i32
    return %arg0, %c0_i32 : i32, i32
  }
}

</mosaic_0001>

<llo_original>
// kernel: tpu_custom_call.1
$region0: #{tpu_custom_call.1}
  #allocation0 [shape = 'u32[]', space=smem, size = 0x4, offset = 0x4, fixed_abs, tag = 'smem constant byte address 0x4 - core index']
  #allocation1 [shape = 'u32[72,128]{1,0:T(1,128)}', space=vmem, size = 0x9000, scoped, tag = 'internal scratch']
  %s0 = inlined_call_operand.vmem [shape: f32[32,16], index: 0, kind: input, shape index: {}]
  %s1 = inlined_call_operand.vmem [shape: f32[3,16,128], index: 1, kind: input, shape index: {}]
  %s2 = inlined_call_operand.vmem [shape: f32[1,128], index: 2, kind: input, shape index: {}]
  %s3 = inlined_call_operand.hbm [shape: f32[32,128], index: 3, kind: output, shape index: {}]
  %s4 = sld [smem:[#allocation0]]
  $region22: #{tpu_custom_call.1} parent=0
    _
  %s6 = ssub.s32 1, %s4
  %s7 = scalar_select 0, %s6, %s4
  $region1: #{tpu_custom_call.1} parent=0
    #allocation2 [shape = 'u8[16384]{0}', space=vmem, size = 0x4000, scoped, tag = 'output window, operand 0, single buffered']
    #allocation3 [shape = 's32[1]{0}', space=sflag, size = 0x4, scoped, tag = 'scoped memory for tpu_custom_call.1']
    %8 = vsyncpa [#allocation3], 0
    // Predicated region
    $region2: #{tpu_custom_call.1} parent=1 // pred_check
      _
    $region3: #{tpu_custom_call.1} parent=1 // pred_check_branch
      %10 = sbr.rel (0) target = $region5
    $region4: #{tpu_custom_call.1} parent=1 // pred_region
      _
    $region5: #{tpu_custom_call.1} parent=1 // pred_fallthru
      _
    // Predicated region
    $region6: #{tpu_custom_call.1} parent=1 // pred_check
      _
    $region7: #{tpu_custom_call.1} parent=1 // pred_check_branch
      %12 = sbr.rel (0) target = $region9
    $region8: #{tpu_custom_call.1} parent=1 // pred_region
      _
    $region9: #{tpu_custom_call.1} parent=1 // pred_fallthru
      _
    // Predicated region
    $region10: #{tpu_custom_call.1} parent=1 // pred_check
      _
    $region11: #{tpu_custom_call.1} parent=1 // pred_check_branch
      %14 = sbr.rel (0) target = $region13
    $region12: #{tpu_custom_call.1} parent=1 // pred_region
      _
    $region13: #{tpu_custom_call.1} parent=1 // pred_fallthru
      _
    %v15 = vld [vmem:[%s0] sm:$0xff]
    %v16 = vld [vmem:[%s0 + $0x8] sm:$0xff]
    %v17 = vld [vmem:[%s0 + $0x10] sm:$0xff]
    %v18 = vld [vmem:[%s0 + $0x18] sm:$0xff]
    %v19 = vld [vmem:[%s2] sm:$0x1]
    %v21 = vperm.slane %v19, 0
    %v23 = vlaneseq
    %v24 = vshrl.u32 %v23, 7
    %v25 = vadd.s32 %v24, 8
    %v26 = vadd.s32 %v24, 16
    %v27 = vadd.s32 %v24, 24
    %v28 = vand.u32 %v24, 15
    %v29 = vand.u32 %v25, 15
    %v30 = vand.u32 %v26, 15
    %v31 = vand.u32 %v27, 15
    %v32 = vrot.slane %v15, 7
    %v33 = vrot.slane %v16, 7
    %v34 = vrot.slane %v17, 7
    %v35 = vrot.slane %v18, 7
    %vm36 = vcmp.lt.s32.totalorder %v24, 1
    %v37 = vsel %vm36, %v34, %v35
    %v38 = vsel %vm36, %v33, %v34
    %v39 = vsel %vm36, %v32, %v33
    %v40 = vsel %vm36, %v35, %v32
    %vm41 = vcmp.ge.s32.totalorder %v28, 1
    %vm42 = vcmp.ge.s32.totalorder %v29, 1
    %vm43 = vcmp.ge.s32.totalorder %v30, 1
    %vm44 = vcmp.ge.s32.totalorder %v31, 1
    %vm45 = vcmp.lt.s32.totalorder %v28, 17
    %vm46 = vcmp.lt.s32.totalorder %v29, 17
    %vm47 = vcmp.lt.s32.totalorder %v30, 17
    %vm48 = vcmp.lt.s32.totalorder %v31, 17
    %vm49 = vmand %vm41, %vm45
    %vm50 = vmand %vm42, %vm46
    %vm51 = vmand %vm43, %vm47
    %vm52 = vmand %vm44, %vm48
    %v53 = vsel %vm49, %v40, 0.0
    %v54 = vsel %vm50, %v39, 0.0
    %v55 = vsel %vm51, %v38, 0.0
    %v56 = vsel %vm52, %v37, 0.0
    %v57 = vld [vmem:[%s1] sm:$0xff]
    %v58 = vld [vmem:[%s1 + $0x8] sm:$0xff]
    %vm59 = vcmask 130048
    %v61 = vsel %vm59, %v53, 0
    %v64 = vsel %vm59, %v54, 0
    %v67 = vsel %vm59, %v55, 0
    %v70 = vsel %vm59, %v56, 0
    %72 = vmatpush.msra.mxu0 0.0
    %73 = vmatpush.msra.mxu0 0.0
    %74 = vmatpush.msra.mxu0 0.0
    %75 = vmatpush.msra.mxu0 0.0
    %76 = vmatpush.msra.mxu0 0.0
    %77 = vmatpush.msra.mxu0 0.0
    %78 = vmatpush.msra.mxu0 0.0
    %79 = vmatpush.msra.mxu0 0.0
    %80 = vmatpush.msra.mxu0 0.0
    %81 = vmatpush.msra.mxu0 0.0
    %82 = vmatpush.msra.mxu0 0.0
    %83 = vmatpush.msra.mxu0 0.0
    %84 = vmatpush.msra.mxu0 0.0
    %85 = vmatpush.msra.mxu0 0.0
    %86 = vmatpush.msra.mxu0 %v58
    %87 = vmatpush.msra.mxu0 %v57
    %88 = vmatmul.f32.gmra.mxu0 %v61
    %v89 = vpop.f32.mrf.mxu0
    %v90 = vadd.f32 0.0, %v89
    %91 = vmatmul.f32.gmra.mxu0 %v64
    %v92 = vpop.f32.mrf.mxu0
    %v93 = vadd.f32 0.0, %v92
    %94 = vmatmul.f32.gmra.mxu0 %v67
    %v95 = vpop.f32.mrf.mxu0
    %v96 = vadd.f32 0.0, %v95
    %97 = vmatmul.f32.gmra.mxu0 %v70
    %v98 = vpop.f32.mrf.mxu0
    %v99 = vadd.f32 0.0, %v98
    %100 = vdwg.mxu0
    %v101 = vadd.f32 %v21, %v90
    %v102 = vadd.f32 %v21, %v93
    %v103 = vadd.f32 %v21, %v96
    %v104 = vadd.f32 %v21, %v99
    %s105 = scalar_lea.vmem %s1, 16
    %v106 = vld [vmem:[%s105] sm:$0xff]
    %v107 = vld [vmem:[%s105 + $0x8] sm:$0xff]
    %v109 = vsel %vm59, %v15, 0
    %v112 = vsel %vm59, %v16, 0
    %v115 = vsel %vm59, %v17, 0
    %v118 = vsel %vm59, %v18, 0
    %120 = vmatpush.msra.mxu0 0.0
    %121 = vmatpush.msra.mxu0 0.0
    %122 = vmatpush.msra.mxu0 0.0
    %123 = vmatpush.msra.mxu0 0.0
    %124 = vmatpush.msra.mxu0 0.0
    %125 = vmatpush.msra.mxu0 0.0
    %126 = vmatpush.msra.mxu0 0.0
    %127 = vmatpush.msra.mxu0 0.0
    %128 = vmatpush.msra.mxu0 0.0
    %129 = vmatpush.msra.mxu0 0.0
    %130 = vmatpush.msra.mxu0 0.0
    %131 = vmatpush.msra.mxu0 0.0
    %132 = vmatpush.msra.mxu0 0.0
    %133 = vmatpush.msra.mxu0 0.0
    %134 = vmatpush.msra.mxu0 %v107
    %135 = vmatpush.msra.mxu0 %v106
    %136 = vmatmul.f32.gmra.mxu0 %v109
    %v137 = vpop.f32.mrf.mxu0
    %v138 = vadd.f32 0.0, %v137
    %139 = vmatmul.f32.gmra.mxu0 %v112
    %v140 = vpop.f32.mrf.mxu0
    %v141 = vadd.f32 0.0, %v140
    %142 = vmatmul.f32.gmra.mxu0 %v115
    %v143 = vpop.f32.mrf.mxu0
    %v144 = vadd.f32 0.0, %v143
    %145 = vmatmul.f32.gmra.mxu0 %v118
    %v146 = vpop.f32.mrf.mxu0
    %v147 = vadd.f32 0.0, %v146
    %148 = vdwg.mxu0
    %v149 = vadd.f32 %v101, %v138
    %v150 = vadd.f32 %v102, %v141
    %v151 = vadd.f32 %v103, %v144
    %v152 = vadd.f32 %v104, %v147
    %v153 = vrot.slane %v15, 1
    %v154 = vrot.slane %v16, 1
    %v155 = vrot.slane %v17, 1
    %v156 = vrot.slane %v18, 1
    %vm157 = vcmp.lt.s32.totalorder %v24, 7
    %v158 = vsel %vm157, %v155, %v156
    %v159 = vsel %vm157, %v154, %v155
    %v160 = vsel %vm157, %v153, %v154
    %v161 = vsel %vm157, %v156, %v153
    %vm162 = vcmp.ge.s32.totalorder %v28, 4294967295
    %vm163 = vcmp.ge.s32.totalorder %v29, 4294967295
    %vm164 = vcmp.ge.s32.totalorder %v30, 4294967295
    %vm165 = vcmp.ge.s32.totalorder %v31, 4294967295
    %vm166 = vcmp.lt.s32.totalorder %v28, 15
    %vm167 = vcmp.lt.s32.totalorder %v29, 15
    %vm168 = vcmp.lt.s32.totalorder %v30, 15
    %vm169 = vcmp.lt.s32.totalorder %v31, 15
    %vm170 = vmand %vm162, %vm166
    %vm171 = vmand %vm163, %vm167
    %vm172 = vmand %vm164, %vm168
    %vm173 = vmand %vm165, %vm169
    %v174 = vsel %vm170, %v160, 0.0
    %v175 = vsel %vm171, %v159, 0.0
    %v176 = vsel %vm172, %v158, 0.0
    %v177 = vsel %vm173, %v161, 0.0
    %s178 = scalar_lea.vmem %s1, 32
    %v179 = vld [vmem:[%s178] sm:$0xff]
    %v180 = vld [vmem:[%s178 + $0x8] sm:$0xff]
    %v182 = vsel %vm59, %v174, 0
    %v185 = vsel %vm59, %v175, 0
    %v188 = vsel %vm59, %v176, 0
    %v191 = vsel %vm59, %v177, 0
    %193 = vmatpush.msra.mxu0 0.0
    %194 = vmatpush.msra.mxu0 0.0
    %195 = vmatpush.msra.mxu0 0.0
    %196 = vmatpush.msra.mxu0 0.0
    %197 = vmatpush.msra.mxu0 0.0
    %198 = vmatpush.msra.mxu0 0.0
    %199 = vmatpush.msra.mxu0 0.0
    %200 = vmatpush.msra.mxu0 0.0
    %201 = vmatpush.msra.mxu0 0.0
    %202 = vmatpush.msra.mxu0 0.0
    %203 = vmatpush.msra.mxu0 0.0
    %204 = vmatpush.msra.mxu0 0.0
    %205 = vmatpush.msra.mxu0 0.0
    %206 = vmatpush.msra.mxu0 0.0
    %207 = vmatpush.msra.mxu0 %v180
    %208 = vmatpush.msra.mxu0 %v179
    %209 = vmatmul.f32.gmra.mxu0 %v182
    %v210 = vpop.f32.mrf.mxu0
    %v211 = vadd.f32 0.0, %v210
    %212 = vmatmul.f32.gmra.mxu0 %v185
    %v213 = vpop.f32.mrf.mxu0
    %v214 = vadd.f32 0.0, %v213
    %215 = vmatmul.f32.gmra.mxu0 %v188
    %v216 = vpop.f32.mrf.mxu0
    %v217 = vadd.f32 0.0, %v216
    %218 = vmatmul.f32.gmra.mxu0 %v191
    %v219 = vpop.f32.mrf.mxu0
    %v220 = vadd.f32 0.0, %v219
    %221 = vdwg.mxu0
    %v222 = vadd.f32 %v149, %v211
    %v223 = vadd.f32 %v150, %v214
    %v224 = vadd.f32 %v151, %v217
    %v225 = vadd.f32 %v152, %v220
    %226 = vst [vmem:[#allocation2] sm:$0xff] %v222
    %227 = vst [vmem:[#allocation2 + $0x8] sm:$0xff] %v223
    %228 = vst [vmem:[#allocation2 + $0x10] sm:$0xff] %v224
    %229 = vst [vmem:[#allocation2 + $0x18] sm:$0xff] %v225
    // Predicated region
    $region14: #{tpu_custom_call.1} parent=1 // pred_check
      _
    $region15: #{tpu_custom_call.1} parent=1 // pred_check_branch
      %231 = sbr.rel (0) target = $region17
    $region16: #{tpu_custom_call.1} parent=1 // pred_region
      %233 = vsyncadd [#allocation3], 0
      %s234 = sshll.u32 [#allocation2], 4
      %s235 = int_to_ptr.vmem [resolvable:$true] %s234
      %s236 = sshll.u32 %s3, 4
      %s237 = int_to_ptr.hbm [resolvable:$true] %s236
      %242 = dma.vmem_to_hbm [thread:$0]  %s235, 512, %s237, [#allocation3], 128, 128, 8
    $region17: #{tpu_custom_call.1} parent=1 // pred_fallthru
      _
    // Predicated region
    $region18: #{tpu_custom_call.1} parent=1 // pred_check
      _
    $region19: #{tpu_custom_call.1} parent=1 // pred_check_branch
      %244 = sbr.rel (0) target = $region21
    $region20: #{tpu_custom_call.1} parent=1 // pred_region
      %246 = dma.done [#allocation3], 512
    $region21: #{tpu_custom_call.1} parent=1 // pred_fallthru
      _
    %247 = vsyncpa [#allocation3], 1

</llo_original>
